<compile_context>
chip_gen: v6e
topology: v6e:2x2x1
jax: 0.10.0
libtpu: 0.0.40
codegen_flags: <defaults>
</compile_context>

<pallas_src>
import jax
import jax.numpy as jnp
from jax.experimental import pallas as pl
from jax.experimental.pallas import tpu as pltpu


# ---------------------------------------------------------------------------
# Kernel
# ---------------------------------------------------------------------------
def _make_fused_kernel(NB, H, W, Cin, Cmid, Cout, out_dtype):
    """Fused (conv3x3 + folded-BN + ReLU) x 2 for NB images per grid step."""
    NBH = NB * H
    dnums = (((1,), (0,)), ((), ()))  # plain (M,K)x(K,N) contraction

    def kernel(x_ref, w1_ref, b1_ref, w2_ref, b2_ref, o_ref):
        # Per-row (within image) boundary masks for the vertical pad=1 halo.
        # They also prevent images packed into the M dimension from bleeding
        # into each other across the batch boundary.
        row = jax.lax.broadcasted_iota(jnp.int32, (NBH, 1), 0) % H
        top = row == 0
        bot = row == H - 1

        def conv_bn_relu(a, w_ref, b_ref):
            # a: (NB*H, K) bf16 operand; w_ref: (3, K, Nout); b_ref: (1, Nout).
            K = a.shape[1]
            zero_row = jnp.zeros((1, K), a.dtype)
            ap = jnp.concatenate([zero_row, a, zero_row], axis=0)  # sublane concat
            up = jnp.where(top, jnp.zeros((), a.dtype), ap[0:NBH])        # row h-1
            dn = jnp.where(bot, jnp.zeros((), a.dtype), ap[2:NBH + 2])    # row h+1
            # Three accumulated MXU dots (one per vertical tap), f32 accumulate.
            acc = jax.lax.dot_general(up, w_ref[0], dnums,
                                      preferred_element_type=jnp.float32)
            acc += jax.lax.dot_general(a, w_ref[1], dnums,
                                       preferred_element_type=jnp.float32)
            acc += jax.lax.dot_general(dn, w_ref[2], dnums,
                                       preferred_element_type=jnp.float32)
            return jnp.maximum(acc + b_ref[...], 0.0)                      # f32

        # ---- stage 1: conv3x3 (BN scale folded into w1) + bias + ReLU ------
        x = x_ref[...].reshape(NBH, W * Cin)          # bf16, no f32 round-trip
        mid = conv_bn_relu(x, w1_ref, b1_ref)         # (NB*H, W*Cmid) f32

        # ---- stage 2: the intermediate never leaves VMEM/vregs -------------
        out = conv_bn_relu(mid.astype(w2_ref.dtype), w2_ref, b2_ref)

        o_ref[...] = out.reshape(NB, H, W * Cout).astype(out_dtype)  # lane-dense

    return kernel


# ---------------------------------------------------------------------------
# Wrapper
# ---------------------------------------------------------------------------
def _toeplitz_weights(w, scale, W):
    """(3,3,Cin,Cout) HWIO conv weights (BN scale folded in) -> per-vertical-tap
    block-Toeplitz stack of shape (3, W*Cin, W*Cout).  The width halo (pad=1)
    is folded in as structural zero rows, so the kernel needs no lane padding.
    Built once in the wrapper (XLA)."""
    kh, kw, Cin, Cout = w.shape
    ws = (w * scale[None, None, None, :]).astype(jnp.float32)  # fold BN scale
    wi = jnp.arange(W)[None, :, None]      # input column index (unpadded)
    wo = jnp.arange(W)[None, None, :]      # output column index
    kj = jnp.arange(kw)[:, None, None]     # horizontal tap
    sel = (wi == wo + kj - 1).astype(jnp.float32)     # (kw, W, W); OOB taps -> 0
    big = jnp.einsum('kpw,hkio->hpiwo', sel, ws)      # (kh, W, Cin, W, Cout)
    return big.reshape(kh, W * Cin, W * Cout)


def _pick_images_per_step(N, H, target_rows=256):
    """Largest divisor NB of N with NB*H <= max(target_rows, H): fills MXU rows
    (M = NB*H up to ~256 for v6e/v7x) while keeping the activation block small;
    for larger N this leaves multiple grid steps for v7x's two TensorCores."""
    best = 1
    for d in range(1, N + 1):
        if N % d == 0 and d * H <= max(target_rows, H):
            best = d
    return best


def conv_block_pallas(x_nhwc, w1, s1, b1, w2, s2, b2,
                      compute_dtype=jnp.bfloat16):
    """Fused conv_block forward on NHWC input via a single pallas_call."""
    N, H, W, Cin = x_nhwc.shape
    Cmid = w1.shape[-1]
    Cout = w2.shape[-1]
    out_dtype = x_nhwc.dtype  # f32 to match PyTorch; bf16 halves v5e writeback

    NB = _pick_images_per_step(N, H)
    assert N % NB == 0

    # One-time weight prep (BN scale + width halo folded in, bf16 MXU operands).
    w1big = _toeplitz_weights(w1, s1, W).astype(compute_dtype)  # (3, W*Cin,  W*Cmid)
    w2big = _toeplitz_weights(w2, s2, W).astype(compute_dtype)  # (3, W*Cmid, W*Cout)
    b1big = jnp.tile(b1.astype(jnp.float32), W).reshape(1, W * Cmid)
    b2big = jnp.tile(b2.astype(jnp.float32), W).reshape(1, W * Cout)

    # Flatten (W, C) -> lanes; no HBM padding copy, no f32 staging copy.
    x_in = x_nhwc.reshape(N, H, W * Cin).astype(compute_dtype)

    kernel = _make_fused_kernel(NB, H, W, Cin, Cmid, Cout, out_dtype)

    # True conv FLOPs (not padded-Toeplitz FLOPs) for the scheduler hint.
    flops = 2 * N * H * W * 9 * Cin * Cmid + 2 * N * H * W * 9 * Cmid * Cout
    itemsize = jnp.dtype(compute_dtype).itemsize
    bytes_accessed = (x_in.size * itemsize
                      + (w1big.size + w2big.size) * itemsize
                      + (b1big.size + b2big.size) * 4
                      + N * H * W * Cout * jnp.dtype(out_dtype).itemsize)

    # TODO(synk): for realistic shapes (W*C >= ~4096) the Toeplitz stack stops
    # fitting v7x's 64 MiB VMEM; then tile it along output columns (extra grid
    # axis with an index_map on w*big) or fall back to a per-tap K=9*Cin
    # contraction, and re-derive vmem_limit_bytes.
    out = pl.pallas_call(
        kernel,
        grid=(N // NB,),
        in_specs=[
            pl.BlockSpec((NB, H, W * Cin), lambda n: (n, 0, 0)),
            # Constant index maps -> weights/bias DMA'd once, VMEM-resident.
            pl.BlockSpec((3, W * Cin, W * Cmid), lambda n: (0, 0, 0)),
            pl.BlockSpec((1, W * Cmid), lambda n: (0, 0)),
            pl.BlockSpec((3, W * Cmid, W * Cout), lambda n: (0, 0, 0)),
            pl.BlockSpec((1, W * Cout), lambda n: (0, 0)),
        ],
        out_specs=pl.BlockSpec((NB, H, W * Cout), lambda n: (n, 0, 0)),
        out_shape=jax.ShapeDtypeStruct((N, H, W * Cout), out_dtype),
        compiler_params=pltpu.CompilerParams(
            dimension_semantics=("parallel",),
            vmem_limit_bytes=32 * 1024 * 1024),
        cost_estimate=pl.CostEstimate(
            flops=flops, transcendentals=0, bytes_accessed=bytes_accessed),
    )(x_in, w1big, b1big, w2big, b2big)

    return out.reshape(N, H, W, Cout)


# ---------------------------------------------------------------------------
# Parameters (inference-mode BN folded into scale/bias)
# ---------------------------------------------------------------------------
def _fold_bn(gamma, beta, mean, var, eps=1e-5):
    scale = gamma / jnp.sqrt(var + eps)
    bias = beta - mean * scale
    return scale, bias


def init_conv_block_params(key, in_channels, out_channels):
    """Deterministic synthetic parameters matching the PyTorch module's shapes."""
    ks = jax.random.split(key, 8)
    # Conv weights in HWIO layout (kh, kw, cin, cout), no conv bias (bias=False).
    w1 = jax.random.normal(ks[0], (3, 3, in_channels, out_channels), jnp.float32) * 0.1
    w2 = jax.random.normal(ks[1], (3, 3, out_channels, out_channels), jnp.float32) * 0.1
    g1 = 1.0 + 0.1 * jax.random.normal(ks[2], (out_channels,), jnp.float32)
    b1 = 0.1 * jax.random.normal(ks[3], (out_channels,), jnp.float32)
    m1 = 0.05 * jax.random.normal(ks[4], (out_channels,), jnp.float32)
    v1 = jnp.abs(1.0 + 0.1 * jax.random.normal(ks[5], (out_channels,), jnp.float32))
    g2 = 1.0 + 0.1 * jax.random.normal(ks[6], (out_channels,), jnp.float32)
    b2 = 0.1 * jax.random.normal(ks[7], (out_channels,), jnp.float32)
    m2 = jnp.zeros((out_channels,), jnp.float32)
    v2 = jnp.ones((out_channels,), jnp.float32)
    s1, bb1 = _fold_bn(g1, b1, m1, v1)
    s2, bb2 = _fold_bn(g2, b2, m2, v2)
    return dict(w1=w1, s1=s1, b1=bb1, w2=w2, s2=s2, b2=bb2)


# ---------------------------------------------------------------------------
# Forward (PyTorch NCHW convention at the boundary)
# ---------------------------------------------------------------------------
@jax.jit
def conv_block_forward(x_nchw, params):
    x = jnp.transpose(x_nchw, (0, 2, 3, 1))                # NCHW -> NHWC
    y = conv_block_pallas(x, params["w1"], params["s1"], params["b1"],
                          params["w2"], params["s2"], params["b2"])
    return jnp.transpose(y, (0, 3, 1, 2))                  # NHWC -> NCHW


def _reference_forward(x_nchw, params, compute_dtype=jnp.bfloat16):
    """Pure-JAX reference with the same bf16-operand / f32-accumulate numerics."""
    def stage(x_nhwc, w, s, b):
        ws = (w * s[None, None, None, :]).astype(compute_dtype)
        y = jax.lax.conv_general_dilated(
            x_nhwc.astype(compute_dtype), ws,
            window_strides=(1, 1), padding=((1, 1), (1, 1)),
            dimension_numbers=("NHWC", "HWIO", "NHWC"),
            preferred_element_type=jnp.float32)
        return jnp.maximum(y + b[None, None, None, :], 0.0)
    x = jnp.transpose(x_nchw, (0, 2, 3, 1))
    x = stage(x, params["w1"], params["s1"], params["b1"])
    x = stage(x, params["w2"], params["s2"], params["b2"])
    return jnp.transpose(x, (0, 3, 1, 2))


if __name__ == "__main__":
    key = jax.random.PRNGKey(0)
    k_x, k_p = jax.random.split(key)

    in_channels, out_channels = 4, 8
    N, H, W = 2, 16, 16
    x = jax.random.normal(k_x, (N, in_channels, H, W), jnp.float32)
    params = init_conv_block_params(k_p, in_channels, out_channels)

    out = conv_block_forward(x, params)
    out = jax.block_until_ready(out)

    ref = _reference_forward(x, params)
    assert out.shape == (N, out_channels, H, W), out.shape
    err = float(jnp.max(jnp.abs(out - ref)))
    assert jnp.allclose(out, ref, atol=2e-2, rtol=2e-2), f"mismatch vs reference: {err}"

    print("KERNEL_OK")
</pallas_src>

<mosaic_0001>
module attributes {stable_mosaic.version = 11 : i64} {
  func.func @kernel(%arg0: i32, %arg1: memref<2x16x64xbf16, #tpu.memory_space<vmem>>, %arg2: memref<3x64x128xbf16, #tpu.memory_space<vmem>>, %arg3: memref<1x128xf32, #tpu.memory_space<vmem>>, %arg4: memref<3x128x128xbf16, #tpu.memory_space<vmem>>, %arg5: memref<1x128xf32, #tpu.memory_space<vmem>>, %arg6: memref<2x16x128xf32, #tpu.memory_space<vmem>>) attributes {dimension_semantics = [#tpu.dimension_semantics<parallel>], iteration_bounds = array<i64: 1>, scalar_prefetch = 0 : i64, scratch_operands = 0 : i64, tpu.core_type = #tpu.core_type<tc>, window_params = [{transform_indices = @transform_0, window_bounds = array<i64: 2, 16, 64>}, {pipeline_mode = #tpu.pipeline_mode<synchronous>, transform_indices = @transform_1, window_bounds = array<i64: 3, 64, 128>}, {pipeline_mode = #tpu.pipeline_mode<synchronous>, transform_indices = @transform_2, window_bounds = array<i64: 1, 128>}, {pipeline_mode = #tpu.pipeline_mode<synchronous>, transform_indices = @transform_3, window_bounds = array<i64: 3, 128, 128>}, {pipeline_mode = #tpu.pipeline_mode<synchronous>, transform_indices = @transform_4, window_bounds = array<i64: 1, 128>}, {transform_indices = @transform_5, window_bounds = array<i64: 2, 16, 128>}]} {
    %0 = tpu.iota {dimensions = array<i32: 0>} : vector<32x1xi32>
    %c16_i32 = arith.constant 16 : i32
    %c0_i32 = arith.constant 0 : i32
    %1 = arith.cmpi eq, %c16_i32, %c0_i32 : i32
    %c1_i32 = arith.constant 1 : i32
    %2 = arith.select %1, %c1_i32, %c16_i32 : i32
    %3 = vector.broadcast %2 : i32 to vector<32x1xi32>
    %4 = arith.remsi %0, %3 : vector<32x1xi32>
    %c0_i32_0 = arith.constant 0 : i32
    %5 = vector.broadcast %c0_i32_0 : i32 to vector<32x1xi32>
    %6 = arith.cmpi ne, %4, %5 : vector<32x1xi32>
    %c0_i32_1 = arith.constant 0 : i32
    %7 = vector.broadcast %c0_i32_1 : i32 to vector<32x1xi32>
    %8 = arith.cmpi slt, %4, %7 : vector<32x1xi32>
    %c0_i32_2 = arith.constant 0 : i32
    %9 = arith.cmpi slt, %2, %c0_i32_2 : i32
    %10 = vector.broadcast %9 : i1 to vector<32x1xi1>
    %11 = vector.broadcast %10 : vector<32x1xi1> to vector<32x1xi1>
    %12 = arith.xori %8, %11 : vector<32x1xi1>
    %13 = arith.andi %12, %6 : vector<32x1xi1>
    %14 = vector.broadcast %2 : i32 to vector<32x1xi32>
    %15 = arith.addi %4, %14 : vector<32x1xi32>
    %16 = arith.select %13, %15, %4 : vector<32x1xi1>, vector<32x1xi32>
    %c0_i32_3 = arith.constant 0 : i32
    %17 = vector.broadcast %c0_i32_3 : i32 to vector<32x1xi32>
    %18 = arith.cmpi eq, %16, %17 : vector<32x1xi32>
    %c15_i32 = arith.constant 15 : i32
    %19 = vector.broadcast %c15_i32 : i32 to vector<32x1xi32>
    %20 = arith.cmpi eq, %16, %19 : vector<32x1xi32>
    %c0 = arith.constant 0 : index
    %c0_4 = arith.constant 0 : index
    %c0_5 = arith.constant 0 : index
    %21 = vector.load %arg1[%c0, %c0_4, %c0_5] : memref<2x16x64xbf16, #tpu.memory_space<vmem>>, vector<2x16x64xbf16>
    %22 = vector.shape_cast %21 : vector<2x16x64xbf16> to vector<32x64xbf16>
    %cst = arith.constant 0.000000e+00 : bf16
    %23 = vector.broadcast %cst : bf16 to vector<1x64xbf16>
    %24 = tpu.concatenate %23, %22, %23 in 0 : vector<1x64xbf16>, vector<32x64xbf16>, vector<1x64xbf16> -> vector<34x64xbf16>
    %25 = vector.extract_strided_slice %24 {offsets = [0, 0], sizes = [32, 64], strides = [1, 1]} : vector<34x64xbf16> to vector<32x64xbf16>
    %cst_6 = arith.constant 0.000000e+00 : bf16
    %26 = vector.shape_cast %18 : vector<32x1xi1> to vector<32x1xi1>
    %27 = vector.broadcast %26 : vector<32x1xi1> to vector<32x64xi1>
    %28 = vector.broadcast %cst_6 : bf16 to vector<32x64xbf16>
    %29 = arith.select %27, %28, %25 : vector<32x64xi1>, vector<32x64xbf16>
    %30 = vector.extract_strided_slice %24 {offsets = [2, 0], sizes = [32, 64], strides = [1, 1]} : vector<34x64xbf16> to vector<32x64xbf16>
    %cst_7 = arith.constant 0.000000e+00 : bf16
    %31 = vector.shape_cast %20 : vector<32x1xi1> to vector<32x1xi1>
    %32 = vector.broadcast %31 : vector<32x1xi1> to vector<32x64xi1>
    %33 = vector.broadcast %cst_7 : bf16 to vector<32x64xbf16>
    %34 = arith.select %32, %33, %30 : vector<32x64xi1>, vector<32x64xbf16>
    %c0_8 = arith.constant 0 : index
    %c0_9 = arith.constant 0 : index
    %c0_10 = arith.constant 0 : index
    %35 = vector.load %arg2[%c0_8, %c0_9, %c0_10] : memref<3x64x128xbf16, #tpu.memory_space<vmem>>, vector<1x64x128xbf16>
    %36 = vector.shape_cast %35 : vector<1x64x128xbf16> to vector<64x128xbf16>
    %cst_11 = arith.constant dense<0.000000e+00> : vector<32x128xf32>
    %37 = tpu.matmul %29, %36, %cst_11 {dimension_numbers = #tpu.dot_dimension_numbers<[1], [0], [0], [1], [0, 0, 1, 1], [], []>} : vector<32x64xbf16>, vector<64x128xbf16>, vector<32x128xf32> -> vector<32x128xf32>
    %c1 = arith.constant 1 : index
    %c0_12 = arith.constant 0 : index
    %c0_13 = arith.constant 0 : index
    %38 = vector.load %arg2[%c1, %c0_12, %c0_13] : memref<3x64x128xbf16, #tpu.memory_space<vmem>>, vector<1x64x128xbf16>
    %39 = vector.shape_cast %38 : vector<1x64x128xbf16> to vector<64x128xbf16>
    %cst_14 = arith.constant dense<0.000000e+00> : vector<32x128xf32>
    %40 = tpu.matmul %22, %39, %cst_14 {dimension_numbers = #tpu.dot_dimension_numbers<[1], [0], [0], [1], [0, 0, 1, 1], [], []>} : vector<32x64xbf16>, vector<64x128xbf16>, vector<32x128xf32> -> vector<32x128xf32>
    %41 = arith.addf %37, %40 : vector<32x128xf32>
    %c2 = arith.constant 2 : index
    %c0_15 = arith.constant 0 : index
    %c0_16 = arith.constant 0 : index
    %42 = vector.load %arg2[%c2, %c0_15, %c0_16] : memref<3x64x128xbf16, #tpu.memory_space<vmem>>, vector<1x64x128xbf16>
    %43 = vector.shape_cast %42 : vector<1x64x128xbf16> to vector<64x128xbf16>
    %cst_17 = arith.constant dense<0.000000e+00> : vector<32x128xf32>
    %44 = tpu.matmul %34, %43, %cst_17 {dimension_numbers = #tpu.dot_dimension_numbers<[1], [0], [0], [1], [0, 0, 1, 1], [], []>} : vector<32x64xbf16>, vector<64x128xbf16>, vector<32x128xf32> -> vector<32x128xf32>
    %45 = arith.addf %41, %44 : vector<32x128xf32>
    %c0_18 = arith.constant 0 : index
    %c0_19 = arith.constant 0 : index
    %46 = vector.load %arg3[%c0_18, %c0_19] : memref<1x128xf32, #tpu.memory_space<vmem>>, vector<1x128xf32>
    %47 = vector.broadcast %46 : vector<1x128xf32> to vector<32x128xf32>
    %48 = arith.addf %45, %47 : vector<32x128xf32>
    %cst_20 = arith.constant 0.000000e+00 : f32
    %49 = vector.broadcast %cst_20 : f32 to vector<32x128xf32>
    %50 = arith.maximumf %48, %49 : vector<32x128xf32>
    %51 = arith.truncf %50 : vector<32x128xf32> to vector<32x128xbf16>
    %cst_21 = arith.constant 0.000000e+00 : bf16
    %52 = vector.broadcast %cst_21 : bf16 to vector<1x128xbf16>
    %53 = tpu.concatenate %52, %51, %52 in 0 : vector<1x128xbf16>, vector<32x128xbf16>, vector<1x128xbf16> -> vector<34x128xbf16>
    %54 = vector.extract_strided_slice %53 {offsets = [0, 0], sizes = [32, 128], strides = [1, 1]} : vector<34x128xbf16> to vector<32x128xbf16>
    %cst_22 = arith.constant 0.000000e+00 : bf16
    %55 = vector.shape_cast %18 : vector<32x1xi1> to vector<32x1xi1>
    %56 = vector.broadcast %55 : vector<32x1xi1> to vector<32x128xi1>
    %57 = vector.broadcast %cst_22 : bf16 to vector<32x128xbf16>
    %58 = arith.select %56, %57, %54 : vector<32x128xi1>, vector<32x128xbf16>
    %59 = vector.extract_strided_slice %53 {offsets = [2, 0], sizes = [32, 128], strides = [1, 1]} : vector<34x128xbf16> to vector<32x128xbf16>
    %cst_23 = arith.constant 0.000000e+00 : bf16
    %60 = vector.shape_cast %20 : vector<32x1xi1> to vector<32x1xi1>
    %61 = vector.broadcast %60 : vector<32x1xi1> to vector<32x128xi1>
    %62 = vector.broadcast %cst_23 : bf16 to vector<32x128xbf16>
    %63 = arith.select %61, %62, %59 : vector<32x128xi1>, vector<32x128xbf16>
    %c0_24 = arith.constant 0 : index
    %c0_25 = arith.constant 0 : index
    %c0_26 = arith.constant 0 : index
    %64 = vector.load %arg4[%c0_24, %c0_25, %c0_26] : memref<3x128x128xbf16, #tpu.memory_space<vmem>>, vector<1x128x128xbf16>
    %65 = vector.shape_cast %64 : vector<1x128x128xbf16> to vector<128x128xbf16>
    %cst_27 = arith.constant dense<0.000000e+00> : vector<32x128xf32>
    %66 = tpu.matmul %58, %65, %cst_27 {dimension_numbers = #tpu.dot_dimension_numbers<[1], [0], [0], [1], [0, 0, 1, 1], [], []>} : vector<32x128xbf16>, vector<128x128xbf16>, vector<32x128xf32> -> vector<32x128xf32>
    %c1_28 = arith.constant 1 : index
    %c0_29 = arith.constant 0 : index
    %c0_30 = arith.constant 0 : index
    %67 = vector.load %arg4[%c1_28, %c0_29, %c0_30] : memref<3x128x128xbf16, #tpu.memory_space<vmem>>, vector<1x128x128xbf16>
    %68 = vector.shape_cast %67 : vector<1x128x128xbf16> to vector<128x128xbf16>
    %cst_31 = arith.constant dense<0.000000e+00> : vector<32x128xf32>
    %69 = tpu.matmul %51, %68, %cst_31 {dimension_numbers = #tpu.dot_dimension_numbers<[1], [0], [0], [1], [0, 0, 1, 1], [], []>} : vector<32x128xbf16>, vector<128x128xbf16>, vector<32x128xf32> -> vector<32x128xf32>
    %70 = arith.addf %66, %69 : vector<32x128xf32>
    %c2_32 = arith.constant 2 : index
    %c0_33 = arith.constant 0 : index
    %c0_34 = arith.constant 0 : index
    %71 = vector.load %arg4[%c2_32, %c0_33, %c0_34] : memref<3x128x128xbf16, #tpu.memory_space<vmem>>, vector<1x128x128xbf16>
    %72 = vector.shape_cast %71 : vector<1x128x128xbf16> to vector<128x128xbf16>
    %cst_35 = arith.constant dense<0.000000e+00> : vector<32x128xf32>
    %73 = tpu.matmul %63, %72, %cst_35 {dimension_numbers = #tpu.dot_dimension_numbers<[1], [0], [0], [1], [0, 0, 1, 1], [], []>} : vector<32x128xbf16>, vector<128x128xbf16>, vector<32x128xf32> -> vector<32x128xf32>
    %74 = arith.addf %70, %73 : vector<32x128xf32>
    %c0_36 = arith.constant 0 : index
    %c0_37 = arith.constant 0 : index
    %75 = vector.load %arg5[%c0_36, %c0_37] : memref<1x128xf32, #tpu.memory_space<vmem>>, vector<1x128xf32>
    %76 = vector.broadcast %75 : vector<1x128xf32> to vector<32x128xf32>
    %77 = arith.addf %74, %76 : vector<32x128xf32>
    %cst_38 = arith.constant 0.000000e+00 : f32
    %78 = vector.broadcast %cst_38 : f32 to vector<32x128xf32>
    %79 = arith.maximumf %77, %78 : vector<32x128xf32>
    %80 = vector.shape_cast %79 : vector<32x128xf32> to vector<2x16x128xf32>
    %c0_39 = arith.constant 0 : index
    %c0_40 = arith.constant 0 : index
    %c0_41 = arith.constant 0 : index
    %81 = vector.load %arg6[%c0_39, %c0_40, %c0_41] : memref<2x16x128xf32, #tpu.memory_space<vmem>>, vector<2x16x128xf32>
    tpu.vector_store %arg6[%c0_39, %c0_40, %c0_41], %80 {strides = array<i32>} : memref<2x16x128xf32, #tpu.memory_space<vmem>>, vector<2x16x128xf32>,
    return
  }
  func.func @transform_0(%arg0: i32) -> (i32, i32, i32) {
    %c0_i32 = arith.constant 0 : i32
    %c0_i32_0 = arith.constant 0 : i32
    %c0_i32_1 = arith.constant 0 : i32
    return %arg0, %c0_i32, %c0_i32_0 : i32, i32, i32
  }
  func.func @transform_1(%arg0: i32) -> (i32, i32, i32) {
    %c0_i32 = arith.constant 0 : i32
    %c0_i32_0 = arith.constant 0 : i32
    %c0_i32_1 = arith.constant 0 : i32
    %c0_i32_2 = arith.constant 0 : i32
    return %c0_i32, %c0_i32_0, %c0_i32_1 : i32, i32, i32
  }
  func.func @transform_2(%arg0: i32) -> (i32, i32) {
    %c0_i32 = arith.constant 0 : i32
    %c0_i32_0 = arith.constant 0 : i32
    %c0_i32_1 = arith.constant 0 : i32
    return %c0_i32, %c0_i32_0 : i32, i32
  }
  func.func @transform_3(%arg0: i32) -> (i32, i32, i32) {
    %c0_i32 = arith.constant 0 : i32
    %c0_i32_0 = arith.constant 0 : i32
    %c0_i32_1 = arith.constant 0 : i32
    %c0_i32_2 = arith.constant 0 : i32
    return %c0_i32, %c0_i32_0, %c0_i32_1 : i32, i32, i32
  }
  func.func @transform_4(%arg0: i32) -> (i32, i32) {
    %c0_i32 = arith.constant 0 : i32
    %c0_i32_0 = arith.constant 0 : i32
    %c0_i32_1 = arith.constant 0 : i32
    return %c0_i32, %c0_i32_0 : i32, i32
  }
  func.func @transform_5(%arg0: i32) -> (i32, i32, i32) {
    %c0_i32 = arith.constant 0 : i32
    %c0_i32_0 = arith.constant 0 : i32
    %c0_i32_1 = arith.constant 0 : i32
    return %arg0, %c0_i32, %c0_i32_0 : i32, i32, i32
  }
}

</mosaic_0001>

<llo_original>
// kernel: tile.13
$region0: #{tile.13}
  #allocation0 [shape = 's32[1]{0}', space=sflag, size = 0x4, scoped, tag = 'scoped memory for tile.13']
  %s0 = inlined_call_operand.vmem [shape: f32[8], index: 0, kind: input, shape index: {}]
  %s1 = inlined_call_operand.vmem [shape: f32[16,8], index: 1, kind: output, shape index: {}]
  // Predicated region
  $region2: #{tile.13} parent=0 // pred_check
    _
  $region3: #{tile.13} parent=0 // pred_check_branch
    %3 = sbr.rel (0) target = $region5
  $region4: #{tile.13} parent=0 // pred_region
    _
  $region5: #{tile.13} parent=0 // pred_fallthru
    _
  %v4 = vld [vmem:[%s0] ss:$0 sm:$0xff]
  %5 = vst [vmem:[%s1] sm:$0xff] %v4
  %s6 = scalar_lea.vmem %s1, 8
  %7 = vst [vmem:[%s6] sm:$0xff] %v4

// kernel: tile.14
$region0: #{tile.14}
  %s0 = inlined_call_operand.vmem [shape: f32[16,8], index: 0, kind: input, shape index: {}]
  %s1 = inlined_call_operand.vmem [shape: f32[1,128], index: 1, kind: output, shape index: {}]
  $region1: #{tile.14} parent=0
    #allocation0 [shape = 'u8[4096]{0}', space=vmem, size = 0x1000, scoped, tag = 'scoped mem for output reshape']
    %v2 = vld [vmem:[%s0] sm:$0x1]
    %vm3 = vcmask 64512
    %4 = vst.msk [vmem:[#allocation0] sm:$0x1] %vm3, %v2
    %s5 = scalar_lea.vmem %s0, 15
    %v6 = vld [vmem:[%s5] sm:$0x1]
    %7 = vrot.lane.b32.xlu0 %v6, 120
    %v8 = vpop.permute.xlu0 %7
    %vm9 = vcmask 1048512
    %10 = vst.msk [vmem:[#allocation0] sm:$0x1] %vm9, %v8
    %s11 = scalar_lea.vmem %s0, 14
    %v12 = vld [vmem:[%s11] sm:$0x1]
    %13 = vrot.lane.b32.xlu0 %v12, 112
    %v14 = vpop.permute.xlu0 %13
    %vm15 = vcmask 982912
    %16 = vst.msk [vmem:[#allocation0] sm:$0x1] %vm15, %v14
    %s17 = scalar_lea.vmem %s0, 13
    %v18 = vld [vmem:[%s17] sm:$0x1]
    %19 = vrot.lane.b32.xlu0 %v18, 104
    %v20 = vpop.permute.xlu0 %19
    %vm21 = vcmask 917312
    %22 = vst.msk [vmem:[#allocation0] sm:$0x1] %vm21, %v20
    %s23 = scalar_lea.vmem %s0, 12
    %v24 = vld [vmem:[%s23] sm:$0x1]
    %25 = vrot.lane.b32.xlu0 %v24, 96
    %v26 = vpop.permute.xlu0 %25
    %vm27 = vcmask 851712
    %28 = vst.msk [vmem:[#allocation0] sm:$0x1] %vm27, %v26
    %s29 = scalar_lea.vmem %s0, 11
    %v30 = vld [vmem:[%s29] sm:$0x1]
    %31 = vrot.lane.b32.xlu0 %v30, 88
    %v32 = vpop.permute.xlu0 %31
    %vm33 = vcmask 786112
    %34 = vst.msk [vmem:[#allocation0] sm:$0x1] %vm33, %v32
    %s35 = scalar_lea.vmem %s0, 10
    %v36 = vld [vmem:[%s35] sm:$0x1]
    %37 = vrot.lane.b32.xlu0 %v36, 80
    %v38 = vpop.permute.xlu0 %37
    %vm39 = vcmask 720512
    %40 = vst.msk [vmem:[#allocation0] sm:$0x1] %vm39, %v38
    %s41 = scalar_lea.vmem %s0, 9
    %v42 = vld [vmem:[%s41] sm:$0x1]
    %43 = vrot.lane.b32.xlu0 %v42, 72
    %v44 = vpop.permute.xlu0 %43
    %vm45 = vcmask 654912
    %46 = vst.msk [vmem:[#allocation0] sm:$0x1] %vm45, %v44
    %s47 = scalar_lea.vmem %s0, 8
    %v48 = vld [vmem:[%s47] sm:$0x1]
    %49 = vrot.lane.b32.xlu0 %v48, 64
    %v50 = vpop.permute.xlu0 %49
    %vm51 = vcmask 589312
    %52 = vst.msk [vmem:[#allocation0] sm:$0x1] %vm51, %v50
    %s53 = scalar_lea.vmem %s0, 7
    %v54 = vld [vmem:[%s53] sm:$0x1]
    %55 = vrot.lane.b32.xlu0 %v54, 56
    %v56 = vpop.permute.xlu0 %55
    %vm57 = vcmask 523712
    %58 = vst.msk [vmem:[#allocation0] sm:$0x1] %vm57, %v56
    %s59 = scalar_lea.vmem %s0, 6
    %v60 = vld [vmem:[%s59] sm:$0x1]
    %61 = vrot.lane.b32.xlu0 %v60, 48
    %v62 = vpop.permute.xlu0 %61
    %vm63 = vcmask 458112
    %64 = vst.msk [vmem:[#allocation0] sm:$0x1] %vm63, %v62
    %s65 = scalar_lea.vmem %s0, 5
    %v66 = vld [vmem:[%s65] sm:$0x1]
    %67 = vrot.lane.b32.xlu0 %v66, 40
    %v68 = vpop.permute.xlu0 %67
    %vm69 = vcmask 392512
    %70 = vst.msk [vmem:[#allocation0] sm:$0x1] %vm69, %v68
    %s71 = scalar_lea.vmem %s0, 4
    %v72 = vld [vmem:[%s71] sm:$0x1]
    %73 = vrot.lane.b32.xlu0 %v72, 32
    %v74 = vpop.permute.xlu0 %73
    %vm75 = vcmask 326912
    %76 = vst.msk [vmem:[#allocation0] sm:$0x1] %vm75, %v74
    %s77 = scalar_lea.vmem %s0, 3
    %v78 = vld [vmem:[%s77] sm:$0x1]
    %79 = vrot.lane.b32.xlu0 %v78, 24
    %v80 = vpop.permute.xlu0 %79
    %vm81 = vcmask 261312
    %82 = vst.msk [vmem:[#allocation0] sm:$0x1] %vm81, %v80
    %s83 = scalar_lea.vmem %s0, 2
    %v84 = vld [vmem:[%s83] sm:$0x1]
    %85 = vrot.lane.b32.xlu0 %v84, 16
    %v86 = vpop.permute.xlu0 %85
    %vm87 = vcmask 195712
    %88 = vst.msk [vmem:[#allocation0] sm:$0x1] %vm87, %v86
    %s89 = scalar_lea.vmem %s0, 1
    %v90 = vld [vmem:[%s89] sm:$0x1]
    %91 = vrot.lane.b32.xlu0 %v90, 8
    %v92 = vpop.permute.xlu0 %91
    %vm93 = vcmask 130112
    %94 = vst.msk [vmem:[#allocation0] sm:$0x1] %vm93, %v92
    %s96 = sshll.u32 1, 1
    %s97 = ssub.s32 %s96, 1
    %v99 = vld [vmem:[#allocation0] sm:%s97]
    %s100 = sshll.u32 1, 1
    %s101 = ssub.s32 %s100, 1
    %102 = vst [vmem:[%s1] sm:%s101] %v99

// kernel: conv_block_forward.1
$region0: #{conv_block_forward.1}
  #allocation0 [shape = 'u32[]', space=smem, size = 0x4, offset = 0x4, fixed_abs, tag = 'smem constant byte address 0x4 - core index']
  #allocation1 [shape = 'u32[144,128]{1,0:T(1,128)}', space=vmem, size = 0x12000, scoped, tag = 'internal scratch']
  %s0 = inlined_call_operand.vmem [shape: bf16[2,16,64], index: 0, kind: input, shape index: {}]
  %s1 = inlined_call_operand.vmem [shape: bf16[3,64,128], index: 1, kind: input, shape index: {}]
  %s2 = inlined_call_operand.vmem [shape: f32[1,128], index: 2, kind: input, shape index: {}]
  %s3 = inlined_call_operand.vmem [shape: bf16[3,128,128], index: 3, kind: input, shape index: {}]
  %s4 = inlined_call_operand.vmem [shape: f32[1,128], index: 4, kind: input, shape index: {}]
  %s5 = inlined_call_operand.vmem [shape: f32[2,16,128], index: 5, kind: output, shape index: {}]
  %s6 = sld [smem:[#allocation0]]
  $region30: #{conv_block_forward.1} parent=0
    _
  %s8 = ssub.s32 1, %s6
  %s9 = scalar_select 0, %s8, %s6
  // Predicated region
  $region2: #{conv_block_forward.1} parent=0 // pred_check
    _
  $region3: #{conv_block_forward.1} parent=0 // pred_check_branch
    %11 = sbr.rel (0) target = $region5
  $region4: #{conv_block_forward.1} parent=0 // pred_region
    _
  $region5: #{conv_block_forward.1} parent=0 // pred_fallthru
    _
  // Predicated region
  $region6: #{conv_block_forward.1} parent=0 // pred_check
    _
  $region7: #{conv_block_forward.1} parent=0 // pred_check_branch
    %13 = sbr.rel (0) target = $region9
  $region8: #{conv_block_forward.1} parent=0 // pred_region
    _
  $region9: #{conv_block_forward.1} parent=0 // pred_fallthru
    _
  // Predicated region
  $region10: #{conv_block_forward.1} parent=0 // pred_check
    _
  $region11: #{conv_block_forward.1} parent=0 // pred_check_branch
    %15 = sbr.rel (0) target = $region13
  $region12: #{conv_block_forward.1} parent=0 // pred_region
    _
  $region13: #{conv_block_forward.1} parent=0 // pred_fallthru
    _
  // Predicated region
  $region14: #{conv_block_forward.1} parent=0 // pred_check
    _
  $region15: #{conv_block_forward.1} parent=0 // pred_check_branch
    %17 = sbr.rel (0) target = $region17
  $region16: #{conv_block_forward.1} parent=0 // pred_region
    _
  $region17: #{conv_block_forward.1} parent=0 // pred_fallthru
    _
  // Predicated region
  $region18: #{conv_block_forward.1} parent=0 // pred_check
    _
  $region19: #{conv_block_forward.1} parent=0 // pred_check_branch
    %19 = sbr.rel (0) target = $region21
  $region20: #{conv_block_forward.1} parent=0 // pred_region
    _
  $region21: #{conv_block_forward.1} parent=0 // pred_fallthru
    _
  %v23 = vlaneseq
  %v24 = vshrl.u32 %v23, 7
  %v25 = vadd.s32 %v24, 8
  %v26 = vadd.s32 %v24, 16
  %v27 = vadd.s32 %v24, 24
  %vm28 = vcmp.lt.s32.totalorder %v24, 0
  %v29 = vsub.s32 0, %v24
  %v30 = vsel %vm28, %v29, %v24
  %v31 = vshrl.u32 %v30, 4
  %v32 = vand.u32 %v30, 15
  %v33 = vsub.s32 0, %v32
  %v34 = vsel %vm28, %v33, %v32
  %vm35 = vcmp.lt.s32.totalorder %v25, 0
  %v36 = vsub.s32 0, %v25
  %v37 = vsel %vm35, %v36, %v25
  %v38 = vshrl.u32 %v37, 4
  %v39 = vand.u32 %v37, 15
  %v40 = vsub.s32 0, %v39
  %v41 = vsel %vm35, %v40, %v39
  %vm42 = vcmp.lt.s32.totalorder %v26, 0
  %v43 = vsub.s32 0, %v26
  %v44 = vsel %vm42, %v43, %v26
  %v45 = vshrl.u32 %v44, 4
  %v46 = vand.u32 %v44, 15
  %v47 = vsub.s32 0, %v46
  %v48 = vsel %vm42, %v47, %v46
  %vm49 = vcmp.lt.s32.totalorder %v27, 0
  %v50 = vsub.s32 0, %v27
  %v51 = vsel %vm49, %v50, %v27
  %v52 = vshrl.u32 %v51, 4
  %v53 = vand.u32 %v51, 15
  %v54 = vsub.s32 0, %v53
  %v55 = vsel %vm49, %v54, %v53
  %vm56 = vcmp.ne.s32.totalorder %v34, 0
  %vm57 = vcmp.ne.s32.totalorder %v41, 0
  %vm58 = vcmp.ne.s32.totalorder %v48, 0
  %vm59 = vcmp.ne.s32.totalorder %v55, 0
  %vm60 = vcmp.lt.s32.totalorder %v34, 0
  %vm61 = vcmp.lt.s32.totalorder %v41, 0
  %vm62 = vcmp.lt.s32.totalorder %v48, 0
  %vm63 = vcmp.lt.s32.totalorder %v55, 0
  %vm64 = vmand %vm60, %vm56
  %vm65 = vmand %vm61, %vm57
  %vm66 = vmand %vm62, %vm58
  %vm67 = vmand %vm63, %vm59
  %v68 = vadd.s32 %v34, 16
  %v69 = vadd.s32 %v41, 16
  %v70 = vadd.s32 %v48, 16
  %v71 = vadd.s32 %v55, 16
  %v72 = vsel %vm64, %v68, %v34
  %v73 = vsel %vm65, %v69, %v41
  %v74 = vsel %vm66, %v70, %v48
  %v75 = vsel %vm67, %v71, %v55
  %vm76 = vcmp.eq.s32.totalorder %v72, 0
  %vm77 = vcmp.eq.s32.totalorder %v73, 0
  %vm78 = vcmp.eq.s32.totalorder %v74, 0
  %vm79 = vcmp.eq.s32.totalorder %v75, 0
  %vm80 = vcmp.eq.s32.totalorder %v72, 15
  %vm81 = vcmp.eq.s32.totalorder %v73, 15
  %vm82 = vcmp.eq.s32.totalorder %v74, 15
  %vm83 = vcmp.eq.s32.totalorder %v75, 15
  %v84 = vld [vmem:[%s0] sm:$0xf]
  %v85 = vld [vmem:[%s0 + $0x4] sm:$0xf]
  %v86 = vld [vmem:[%s0 + $0x8] sm:$0xf]
  %v87 = vld [vmem:[%s0 + $0xc] sm:$0xf]
  %v92 = vunpack.c.l.b16 %v84
  %v93 = vunpack.c.l.b16 %v85
  %v94 = vunpack.c.l.b16 %v86
  %v95 = vunpack.c.l.b16 %v87
  %v96 = vpack.c.b16 %v93, %v92
  %v97 = vpack.c.b16 %v95, %v94
  %vm98 = vsmask.f32 256
  %v100 = vshrl.u32 %v96, 16
  %v102 = vrot.slane %v100, 7
  %v103 = vshll.u32 %v96, 16
  %v105 = vor.u32 %v102, %v103
  %v107 = vshrl.u32 %v97, 16
  %v109 = vrot.slane %v107, 7
  %v110 = vshll.u32 %v97, 16
  %v112 = vor.u32 %v109, %v110
  %v113 = vsel %vm98, %v102, %v112
  %vm117 = vcmask 1040384
  %vm118 = vmand %vm117, %vm98
  %v119 = vsel %vm118, 0, %v105
  %v120 = vsel %vm118, %v109, 0
  %v121 = vsel %vm76, 1, 0
  %v122 = vsel %vm77, 1, 0
  %v123 = vsel %vm78, 1, 0
  %v124 = vsel %vm79, 1, 0
  %vm125 = vcmp.eq.s32.totalorder %v121, 1
  %vm126 = vcmp.eq.s32.totalorder %v122, 1
  %vm127 = vcmp.eq.s32.totalorder %v123, 1
  %vm128 = vcmp.eq.s32.totalorder %v124, 1
  %vm129 = vmpackc.low %vm125, %vm125
  %vm130 = vmpackc.low %vm126, %vm126
  %vm131 = vmpackc.low %vm127, %vm127
  %vm132 = vmpackc.low %vm128, %vm128
  %v133 = vsel %vm129, 65537, 0
  %v134 = vsel %vm130, 65537, 0
  %v135 = vsel %vm131, 65537, 0
  %v136 = vsel %vm132, 65537, 0
  %v137 = vunpack.c.l.b16 %v133
  %v138 = vunpack.c.l.b16 %v134
  %v139 = vunpack.c.l.b16 %v135
  %v140 = vunpack.c.l.b16 %v136
  %v141 = vpack.c.b16 %v138, %v137
  %v142 = vpack.c.b16 %v140, %v139
  %vm143 = vcmp.ne.s16.totalorder %v141, 0
  %vm144 = vcmp.ne.s16.totalorder %v142, 0
  %v145 = vsel %vm143, 0, %v119
  %v146 = vsel %vm144, 0, %v113
  %v147 = vsel %vm80, 1, 0
  %v148 = vsel %vm81, 1, 0
  %v149 = vsel %vm82, 1, 0
  %v150 = vsel %vm83, 1, 0
  %vm151 = vcmp.eq.s32.totalorder %v147, 1
  %vm152 = vcmp.eq.s32.totalorder %v148, 1
  %vm153 = vcmp.eq.s32.totalorder %v149, 1
  %vm154 = vcmp.eq.s32.totalorder %v150, 1
  %vm155 = vmpackc.low %vm151, %vm151
  %vm156 = vmpackc.low %vm152, %vm152
  %vm157 = vmpackc.low %vm153, %vm153
  %vm158 = vmpackc.low %vm154, %vm154
  %v159 = vsel %vm155, 65537, 0
  %v160 = vsel %vm156, 65537, 0
  %v161 = vsel %vm157, 65537, 0
  %v162 = vsel %vm158, 65537, 0
  %v163 = vunpack.c.l.b16 %v159
  %v164 = vunpack.c.l.b16 %v160
  %v165 = vunpack.c.l.b16 %v161
  %v166 = vunpack.c.l.b16 %v162
  %v167 = vpack.c.b16 %v164, %v163
  %v168 = vpack.c.b16 %v166, %v165
  %v169 = vrot.slane %v167, 7
  %v170 = vrot.slane %v168, 7
  %v171 = vsel %vm117, %v169, %v170
  %vm172 = vcmp.ne.s16.totalorder %v169, 0
  %vm173 = vcmp.ne.s16.totalorder %v171, 0
  %vm174 = vcmp.ne.s16.totalorder %v170, 0
  %v175 = vsel %vm172, 0, %v119
  %v176 = vsel %vm173, 0, %v113
  %v177 = vsel %vm174, 0, %v120
  %v178 = vld [vmem:[%s1] sm:$0xf]
  %v179 = vld [vmem:[%s1 + $0x4] sm:$0xf]
  %v180 = vld [vmem:[%s1 + $0x8] sm:$0xf]
  %v181 = vld [vmem:[%s1 + $0xc] sm:$0xf]
  %v182 = vld [vmem:[%s1 + $0x10] sm:$0xf]
  %v183 = vld [vmem:[%s1 + $0x14] sm:$0xf]
  %v184 = vld [vmem:[%s1 + $0x18] sm:$0xf]
  %v185 = vld [vmem:[%s1 + $0x1c] sm:$0xf]
  %s186 = scalar_lea.vmem %s1, 32
  %v187 = vld [vmem:[%s186] sm:$0xf]
  %v188 = vld [vmem:[%s186 + $0x4] sm:$0xf]
  %v189 = vld [vmem:[%s186 + $0x8] sm:$0xf]
  %v190 = vld [vmem:[%s186 + $0xc] sm:$0xf]
  %v191 = vld [vmem:[%s186 + $0x10] sm:$0xf]
  %v192 = vld [vmem:[%s186 + $0x14] sm:$0xf]
  %v193 = vld [vmem:[%s186 + $0x18] sm:$0xf]
  %v194 = vld [vmem:[%s186 + $0x1c] sm:$0xf]
  %v203 = vunpack.c.l.b16 %v187
  %v204 = vunpack.c.l.b16 %v188
  %v205 = vunpack.c.l.b16 %v189
  %v206 = vunpack.c.l.b16 %v190
  %v207 = vunpack.c.l.b16 %v191
  %v208 = vunpack.c.l.b16 %v192
  %v209 = vunpack.c.l.b16 %v193
  %v210 = vunpack.c.l.b16 %v194
  %v211 = vpack.c.b16 %v204, %v203
  %v212 = vpack.c.b16 %v206, %v205
  %v213 = vpack.c.b16 %v208, %v207
  %v214 = vpack.c.b16 %v210, %v209
  %vm219 = vcmask 523264
  %v220 = vsel %vm219, %v96, 0
  %v222 = vsel %vm219, %v97, 0
  %224 = vmatprep.subr.bf16.mxu0 0
  %225 = vmatpush1.bf16.msra.mxu0 0
  %226 = vmatprep.subr.bf16.mxu0 0
  %227 = vmatpush1.bf16.msra.mxu0 0
  %228 = vmatprep.subr.bf16.mxu0 0
  %229 = vmatpush1.bf16.msra.mxu0 0
  %230 = vmatprep.subr.bf16.mxu0 0
  %231 = vmatpush1.bf16.msra.mxu0 0
  %232 = vmatprep.subr.bf16.mxu0 0
  %233 = vmatpush1.bf16.msra.mxu0 %v214
  %234 = vmatprep.subr.bf16.mxu0 0
  %235 = vmatpush1.bf16.msra.mxu0 %v213
  %236 = vmatprep.subr.bf16.mxu0 0
  %237 = vmatpush1.bf16.msra.mxu0 %v212
  %238 = vmatprep.subr.bf16.mxu0 0
  %239 = vmatpush1.bf16.msra.mxu0 %v211
  %240 = vmatprep.subr.bf16.mxu0 0
  %241 = vmatpush2.bf16.msra.mxu0 0
  %242 = vmatprep.subr.bf16.mxu0 0
  %243 = vmatpush2.bf16.msra.mxu0 0
  %244 = vmatprep.subr.bf16.mxu0 0
  %245 = vmatpush2.bf16.msra.mxu0 0
  %246 = vmatprep.subr.bf16.mxu0 0
  %247 = vmatpush2.bf16.msra.mxu0 0
  %248 = vmatprep.subr.bf16.mxu0 0
  %249 = vmatpush2.bf16.msra.mxu0 0
  %250 = vmatprep.subr.bf16.mxu0 0
  %251 = vmatpush2.bf16.msra.mxu0 0
  %252 = vmatprep.subr.bf16.mxu0 0
  %253 = vmatpush2.bf16.msra.mxu0 0
  %254 = vmatprep.subr.bf16.mxu0 0
  %255 = vmatpush2.bf16.msra.mxu0 0
  %256 = vmatprep.mubr.bf16.mxu0 0
  %257 = vmatmul.mubr.bf16.gmra.mxu0 %v220
  %v258 = vpop.f32.mrf.mxu0
  %v259 = vadd.f32 0.0, %v258
  %v260 = vpop.f32.mrf.mxu0
  %v261 = vpop.f32.mrf.mxu0
  %v262 = vadd.f32 0.0, %v261
  %v263 = vpop.f32.mrf.mxu0
  %264 = vmatprep.mubr.bf16.mxu0 0
  %265 = vmatmul.mubr.bf16.gmra.mxu0 %v222
  %v266 = vpop.f32.mrf.mxu0
  %v267 = vadd.f32 0.0, %v266
  %v268 = vpop.f32.mrf.mxu0
  %v269 = vpop.f32.mrf.mxu0
  %v270 = vadd.f32 0.0, %v269
  %v271 = vpop.f32.mrf.mxu0
  %272 = vdwg.mxu0
  %v281 = vunpack.c.l.b16 %v178
  %v282 = vunpack.c.l.b16 %v179
  %v283 = vunpack.c.l.b16 %v180
  %v284 = vunpack.c.l.b16 %v181
  %v285 = vunpack.c.l.b16 %v182
  %v286 = vunpack.c.l.b16 %v183
  %v287 = vunpack.c.l.b16 %v184
  %v288 = vunpack.c.l.b16 %v185
  %v289 = vpack.c.b16 %v282, %v281
  %v290 = vpack.c.b16 %v284, %v283
  %v291 = vpack.c.b16 %v286, %v285
  %v292 = vpack.c.b16 %v288, %v287
  %v298 = vsel %vm219, %v145, 0
  %v301 = vsel %vm219, %v146, 0
  %303 = vmatprep.subr.bf16.mxu0 0
  %304 = vmatpush1.bf16.msra.mxu0 0
  %305 = vmatprep.subr.bf16.mxu0 0
  %306 = vmatpush1.bf16.msra.mxu0 0
  %307 = vmatprep.subr.bf16.mxu0 0
  %308 = vmatpush1.bf16.msra.mxu0 0
  %309 = vmatprep.subr.bf16.mxu0 0
  %310 = vmatpush1.bf16.msra.mxu0 0
  %311 = vmatprep.subr.bf16.mxu0 0
  %312 = vmatpush1.bf16.msra.mxu0 %v292
  %313 = vmatprep.subr.bf16.mxu0 0
  %314 = vmatpush1.bf16.msra.mxu0 %v291
  %315 = vmatprep.subr.bf16.mxu0 0
  %316 = vmatpush1.bf16.msra.mxu0 %v290
  %317 = vmatprep.subr.bf16.mxu0 0
  %318 = vmatpush1.bf16.msra.mxu0 %v289
  %319 = vmatprep.subr.bf16.mxu0 0
  %320 = vmatpush2.bf16.msra.mxu0 0
  %321 = vmatprep.subr.bf16.mxu0 0
  %322 = vmatpush2.bf16.msra.mxu0 0
  %323 = vmatprep.subr.bf16.mxu0 0
  %324 = vmatpush2.bf16.msra.mxu0 0
  %325 = vmatprep.subr.bf16.mxu0 0
  %326 = vmatpush2.bf16.msra.mxu0 0
  %327 = vmatprep.subr.bf16.mxu0 0
  %328 = vmatpush2.bf16.msra.mxu0 0
  %329 = vmatprep.subr.bf16.mxu0 0
  %330 = vmatpush2.bf16.msra.mxu0 0
  %331 = vmatprep.subr.bf16.mxu0 0
  %332 = vmatpush2.bf16.msra.mxu0 0
  %333 = vmatprep.subr.bf16.mxu0 0
  %334 = vmatpush2.bf16.msra.mxu0 0
  %335 = vmatprep.mubr.bf16.mxu0 0
  %336 = vmatmul.mubr.bf16.gmra.mxu0 %v298
  %v337 = vpop.f32.mrf.mxu0
  %v338 = vadd.f32 %v259, %v337
  %v339 = vpop.f32.mrf.mxu0
  %v340 = vpop.f32.mrf.mxu0
  %v341 = vadd.f32 %v262, %v340
  %v342 = vpop.f32.mrf.mxu0
  %343 = vmatprep.mubr.bf16.mxu0 0
  %344 = vmatmul.mubr.bf16.gmra.mxu0 %v301
  %v345 = vpop.f32.mrf.mxu0
  %v346 = vadd.f32 %v267, %v345
  %v347 = vpop.f32.mrf.mxu0
  %v348 = vpop.f32.mrf.mxu0
  %v349 = vadd.f32 %v270, %v348
  %v350 = vpop.f32.mrf.mxu0
  %351 = vdwg.mxu0
  %s352 = scalar_lea.vmem %s1, 64
  %v353 = vld [vmem:[%s352] sm:$0xf]
  %v354 = vld [vmem:[%s352 + $0x4] sm:$0xf]
  %v355 = vld [vmem:[%s352 + $0x8] sm:$0xf]
  %v356 = vld [vmem:[%s352 + $0xc] sm:$0xf]
  %v357 = vld [vmem:[%s352 + $0x10] sm:$0xf]
  %v358 = vld [vmem:[%s352 + $0x14] sm:$0xf]
  %v359 = vld [vmem:[%s352 + $0x18] sm:$0xf]
  %v360 = vld [vmem:[%s352 + $0x1c] sm:$0xf]
  %vm364 = vcmask 1046528
  %v365 = vrot.slane %v175, 1
  %v366 = vrot.slane %v176, 1
  %v367 = vsel %vm364, %v365, %v366
  %v368 = vrot.slane %v177, 1
  %v369 = vsel %vm364, %v366, %v368
  %v378 = vunpack.c.l.b16 %v353
  %v379 = vunpack.c.l.b16 %v354
  %v380 = vunpack.c.l.b16 %v355
  %v381 = vunpack.c.l.b16 %v356
  %v382 = vunpack.c.l.b16 %v357
  %v383 = vunpack.c.l.b16 %v358
  %v384 = vunpack.c.l.b16 %v359
  %v385 = vunpack.c.l.b16 %v360
  %v386 = vpack.c.b16 %v379, %v378
  %v387 = vpack.c.b16 %v381, %v380
  %v388 = vpack.c.b16 %v383, %v382
  %v389 = vpack.c.b16 %v385, %v384
  %v395 = vsel %vm219, %v367, 0
  %v398 = vsel %vm219, %v369, 0
  %400 = vmatprep.subr.bf16.mxu0 0
  %401 = vmatpush1.bf16.msra.mxu0 0
  %402 = vmatprep.subr.bf16.mxu0 0
  %403 = vmatpush1.bf16.msra.mxu0 0
  %404 = vmatprep.subr.bf16.mxu0 0
  %405 = vmatpush1.bf16.msra.mxu0 0
  %406 = vmatprep.subr.bf16.mxu0 0
  %407 = vmatpush1.bf16.msra.mxu0 0
  %408 = vmatprep.subr.bf16.mxu0 0
  %409 = vmatpush1.bf16.msra.mxu0 %v389
  %410 = vmatprep.subr.bf16.mxu0 0
  %411 = vmatpush1.bf16.msra.mxu0 %v388
  %412 = vmatprep.subr.bf16.mxu0 0
  %413 = vmatpush1.bf16.msra.mxu0 %v387
  %414 = vmatprep.subr.bf16.mxu0 0
  %415 = vmatpush1.bf16.msra.mxu0 %v386
  %416 = vmatprep.subr.bf16.mxu0 0
  %417 = vmatpush2.bf16.msra.mxu0 0
  %418 = vmatprep.subr.bf16.mxu0 0
  %419 = vmatpush2.bf16.msra.mxu0 0
  %420 = vmatprep.subr.bf16.mxu0 0
  %421 = vmatpush2.bf16.msra.mxu0 0
  %422 = vmatprep.subr.bf16.mxu0 0
  %423 = vmatpush2.bf16.msra.mxu0 0
  %424 = vmatprep.subr.bf16.mxu0 0
  %425 = vmatpush2.bf16.msra.mxu0 0
  %426 = vmatprep.subr.bf16.mxu0 0
  %427 = vmatpush2.bf16.msra.mxu0 0
  %428 = vmatprep.subr.bf16.mxu0 0
  %429 = vmatpush2.bf16.msra.mxu0 0
  %430 = vmatprep.subr.bf16.mxu0 0
  %431 = vmatpush2.bf16.msra.mxu0 0
  %432 = vmatprep.mubr.bf16.mxu0 0
  %433 = vmatmul.mubr.bf16.gmra.mxu0 %v395
  %v434 = vpop.f32.mrf.mxu0
  %v435 = vadd.f32 0.0, %v434
  %v436 = vpop.f32.mrf.mxu0
  %v437 = vpop.f32.mrf.mxu0
  %v438 = vadd.f32 0.0, %v437
  %v439 = vpop.f32.mrf.mxu0
  %440 = vmatprep.mubr.bf16.mxu0 0
  %441 = vmatmul.mubr.bf16.gmra.mxu0 %v398
  %v442 = vpop.f32.mrf.mxu0
  %v443 = vadd.f32 0.0, %v442
  %v444 = vpop.f32.mrf.mxu0
  %v445 = vpop.f32.mrf.mxu0
  %v446 = vadd.f32 0.0, %v445
  %v447 = vpop.f32.mrf.mxu0
  %448 = vdwg.mxu0
  %v449 = vadd.f32 %v338, %v435
  %v450 = vadd.f32 %v341, %v438
  %v451 = vadd.f32 %v346, %v443
  %v452 = vadd.f32 %v349, %v446
  %v453 = vld [vmem:[%s2] sm:$0x1]
  %v455 = vlaneseq
  %v456 = vshrl.u32 %v455, 7
  %v457 = vsub.s32 0, %v456
  %v458 = vrot.slane %v453, %v457
  %v460 = vadd.f32 %v449, %v458
  %v461 = vadd.f32 %v450, %v458
  %v462 = vadd.f32 %v451, %v458
  %v463 = vadd.f32 %v452, %v458
  %v464 = vmax.f32 %v460, 0.0
  %v465 = vmax.f32 %v461, 0.0
  %v466 = vmax.f32 %v462, 0.0
  %v467 = vmax.f32 %v463, 0.0
  %v468 = vpack.c.bf16 %v465, %v464
  %v469 = vpack.c.bf16 %v467, %v466
  %v471 = vshrl.u32 %v468, 16
  %v473 = vrot.slane %v471, 7
  %v474 = vshll.u32 %v468, 16
  %v476 = vor.u32 %v473, %v474
  %v478 = vshrl.u32 %v469, 16
  %v480 = vrot.slane %v478, 7
  %v481 = vshll.u32 %v469, 16
  %v483 = vor.u32 %v480, %v481
  %v484 = vsel %vm98, %v473, %v483
  %v488 = vsel %vm118, 0, %v476
  %v489 = vsel %vm118, %v480, 0
  %v490 = vsel %vm143, 0, %v488
  %v491 = vsel %vm144, 0, %v484
  %v492 = vsel %vm172, 0, %v488
  %v493 = vsel %vm173, 0, %v484
  %v494 = vsel %vm174, 0, %v489
  %v495 = vld [vmem:[%s3] sm:$0xf]
  %v496 = vld [vmem:[%s3 + $0x4] sm:$0xf]
  %v497 = vld [vmem:[%s3 + $0x8] sm:$0xf]
  %v498 = vld [vmem:[%s3 + $0xc] sm:$0xf]
  %v499 = vld [vmem:[%s3 + $0x10] sm:$0xf]
  %v500 = vld [vmem:[%s3 + $0x14] sm:$0xf]
  %v501 = vld [vmem:[%s3 + $0x18] sm:$0xf]
  %v502 = vld [vmem:[%s3 + $0x1c] sm:$0xf]
  %v503 = vld [vmem:[%s3 + $0x20] sm:$0xf]
  %v504 = vld [vmem:[%s3 + $0x24] sm:$0xf]
  %v505 = vld [vmem:[%s3 + $0x28] sm:$0xf]
  %v506 = vld [vmem:[%s3 + $0x2c] sm:$0xf]
  %v507 = vld [vmem:[%s3 + $0x30] sm:$0xf]
  %v508 = vld [vmem:[%s3 + $0x34] sm:$0xf]
  %v509 = vld [vmem:[%s3 + $0x38] sm:$0xf]
  %v510 = vld [vmem:[%s3 + $0x3c] sm:$0xf]
  %s511 = scalar_lea.vmem %s3, 64
  %v512 = vld [vmem:[%s511] sm:$0xf]
  %v513 = vld [vmem:[%s511 + $0x4] sm:$0xf]
  %v514 = vld [vmem:[%s511 + $0x8] sm:$0xf]
  %v515 = vld [vmem:[%s511 + $0xc] sm:$0xf]
  %v516 = vld [vmem:[%s511 + $0x10] sm:$0xf]
  %v517 = vld [vmem:[%s511 + $0x14] sm:$0xf]
  %v518 = vld [vmem:[%s511 + $0x18] sm:$0xf]
  %v519 = vld [vmem:[%s511 + $0x1c] sm:$0xf]
  %v520 = vld [vmem:[%s511 + $0x20] sm:$0xf]
  %v521 = vld [vmem:[%s511 + $0x24] sm:$0xf]
  %v522 = vld [vmem:[%s511 + $0x28] sm:$0xf]
  %v523 = vld [vmem:[%s511 + $0x2c] sm:$0xf]
  %v524 = vld [vmem:[%s511 + $0x30] sm:$0xf]
  %v525 = vld [vmem:[%s511 + $0x34] sm:$0xf]
  %v526 = vld [vmem:[%s511 + $0x38] sm:$0xf]
  %v527 = vld [vmem:[%s511 + $0x3c] sm:$0xf]
  %v544 = vunpack.c.l.b16 %v512
  %v545 = vunpack.c.l.b16 %v513
  %v546 = vunpack.c.l.b16 %v514
  %v547 = vunpack.c.l.b16 %v515
  %v548 = vunpack.c.l.b16 %v516
  %v549 = vunpack.c.l.b16 %v517
  %v550 = vunpack.c.l.b16 %v518
  %v551 = vunpack.c.l.b16 %v519
  %v552 = vunpack.c.l.b16 %v520
  %v553 = vunpack.c.l.b16 %v521
  %v554 = vunpack.c.l.b16 %v522
  %v555 = vunpack.c.l.b16 %v523
  %v556 = vunpack.c.l.b16 %v524
  %v557 = vunpack.c.l.b16 %v525
  %v558 = vunpack.c.l.b16 %v526
  %v559 = vunpack.c.l.b16 %v527
  %v560 = vpack.c.b16 %v545, %v544
  %v561 = vpack.c.b16 %v547, %v546
  %v562 = vpack.c.b16 %v549, %v548
  %v563 = vpack.c.b16 %v551, %v550
  %v564 = vpack.c.b16 %v553, %v552
  %v565 = vpack.c.b16 %v555, %v554
  %v566 = vpack.c.b16 %v557, %v556
  %v567 = vpack.c.b16 %v559, %v558
  %576 = vmatprep.subr.bf16.mxu0 0
  %577 = vmatpush1.bf16.msra.mxu0 %v567
  %578 = vmatprep.subr.bf16.mxu0 0
  %579 = vmatpush1.bf16.msra.mxu0 %v566
  %580 = vmatprep.subr.bf16.mxu0 0
  %581 = vmatpush1.bf16.msra.mxu0 %v565
  %582 = vmatprep.subr.bf16.mxu0 0
  %583 = vmatpush1.bf16.msra.mxu0 %v564
  %584 = vmatprep.subr.bf16.mxu0 0
  %585 = vmatpush1.bf16.msra.mxu0 %v563
  %586 = vmatprep.subr.bf16.mxu0 0
  %587 = vmatpush1.bf16.msra.mxu0 %v562
  %588 = vmatprep.subr.bf16.mxu0 0
  %589 = vmatpush1.bf16.msra.mxu0 %v561
  %590 = vmatprep.subr.bf16.mxu0 0
  %591 = vmatpush1.bf16.msra.mxu0 %v560
  %592 = vmatprep.subr.bf16.mxu0 0
  %593 = vmatpush2.bf16.msra.mxu0 0
  %594 = vmatprep.subr.bf16.mxu0 0
  %595 = vmatpush2.bf16.msra.mxu0 0
  %596 = vmatprep.subr.bf16.mxu0 0
  %597 = vmatpush2.bf16.msra.mxu0 0
  %598 = vmatprep.subr.bf16.mxu0 0
  %599 = vmatpush2.bf16.msra.mxu0 0
  %600 = vmatprep.subr.bf16.mxu0 0
  %601 = vmatpush2.bf16.msra.mxu0 0
  %602 = vmatprep.subr.bf16.mxu0 0
  %603 = vmatpush2.bf16.msra.mxu0 0
  %604 = vmatprep.subr.bf16.mxu0 0
  %605 = vmatpush2.bf16.msra.mxu0 0
  %606 = vmatprep.subr.bf16.mxu0 0
  %607 = vmatpush2.bf16.msra.mxu0 0
  %608 = vmatprep.mubr.bf16.mxu0 0
  %609 = vmatmul.mubr.bf16.gmra.mxu0 %v468
  %v610 = vpop.f32.mrf.mxu0
  %v611 = vadd.f32 0.0, %v610
  %v612 = vpop.f32.mrf.mxu0
  %v613 = vpop.f32.mrf.mxu0
  %v614 = vadd.f32 0.0, %v613
  %v615 = vpop.f32.mrf.mxu0
  %616 = vmatprep.mubr.bf16.mxu0 0
  %617 = vmatmul.mubr.bf16.gmra.mxu0 %v469
  %v618 = vpop.f32.mrf.mxu0
  %v619 = vadd.f32 0.0, %v618
  %v620 = vpop.f32.mrf.mxu0
  %v621 = vpop.f32.mrf.mxu0
  %v622 = vadd.f32 0.0, %v621
  %v623 = vpop.f32.mrf.mxu0
  %624 = vdwg.mxu0
  %v641 = vunpack.c.l.b16 %v495
  %v642 = vunpack.c.l.b16 %v496
  %v643 = vunpack.c.l.b16 %v497
  %v644 = vunpack.c.l.b16 %v498
  %v645 = vunpack.c.l.b16 %v499
  %v646 = vunpack.c.l.b16 %v500
  %v647 = vunpack.c.l.b16 %v501
  %v648 = vunpack.c.l.b16 %v502
  %v649 = vunpack.c.l.b16 %v503
  %v650 = vunpack.c.l.b16 %v504
  %v651 = vunpack.c.l.b16 %v505
  %v652 = vunpack.c.l.b16 %v506
  %v653 = vunpack.c.l.b16 %v507
  %v654 = vunpack.c.l.b16 %v508
  %v655 = vunpack.c.l.b16 %v509
  %v656 = vunpack.c.l.b16 %v510
  %v657 = vpack.c.b16 %v642, %v641
  %v658 = vpack.c.b16 %v644, %v643
  %v659 = vpack.c.b16 %v646, %v645
  %v660 = vpack.c.b16 %v648, %v647
  %v661 = vpack.c.b16 %v650, %v649
  %v662 = vpack.c.b16 %v652, %v651
  %v663 = vpack.c.b16 %v654, %v653
  %v664 = vpack.c.b16 %v656, %v655
  %673 = vmatprep.subr.bf16.mxu0 0
  %674 = vmatpush1.bf16.msra.mxu0 %v664
  %675 = vmatprep.subr.bf16.mxu0 0
  %676 = vmatpush1.bf16.msra.mxu0 %v663
  %677 = vmatprep.subr.bf16.mxu0 0
  %678 = vmatpush1.bf16.msra.mxu0 %v662
  %679 = vmatprep.subr.bf16.mxu0 0
  %680 = vmatpush1.bf16.msra.mxu0 %v661
  %681 = vmatprep.subr.bf16.mxu0 0
  %682 = vmatpush1.bf16.msra.mxu0 %v660
  %683 = vmatprep.subr.bf16.mxu0 0
  %684 = vmatpush1.bf16.msra.mxu0 %v659
  %685 = vmatprep.subr.bf16.mxu0 0
  %686 = vmatpush1.bf16.msra.mxu0 %v658
  %687 = vmatprep.subr.bf16.mxu0 0
  %688 = vmatpush1.bf16.msra.mxu0 %v657
  %689 = vmatprep.subr.bf16.mxu0 0
  %690 = vmatpush2.bf16.msra.mxu0 0
  %691 = vmatprep.subr.bf16.mxu0 0
  %692 = vmatpush2.bf16.msra.mxu0 0
  %693 = vmatprep.subr.bf16.mxu0 0
  %694 = vmatpush2.bf16.msra.mxu0 0
  %695 = vmatprep.subr.bf16.mxu0 0
  %696 = vmatpush2.bf16.msra.mxu0 0
  %697 = vmatprep.subr.bf16.mxu0 0
  %698 = vmatpush2.bf16.msra.mxu0 0
  %699 = vmatprep.subr.bf16.mxu0 0
  %700 = vmatpush2.bf16.msra.mxu0 0
  %701 = vmatprep.subr.bf16.mxu0 0
  %702 = vmatpush2.bf16.msra.mxu0 0
  %703 = vmatprep.subr.bf16.mxu0 0
  %704 = vmatpush2.bf16.msra.mxu0 0
  %705 = vmatprep.mubr.bf16.mxu0 0
  %706 = vmatmul.mubr.bf16.gmra.mxu0 %v490
  %v707 = vpop.f32.mrf.mxu0
  %v708 = vadd.f32 %v611, %v707
  %v709 = vpop.f32.mrf.mxu0
  %v710 = vpop.f32.mrf.mxu0
  %v711 = vadd.f32 %v614, %v710
  %v712 = vpop.f32.mrf.mxu0
  %713 = vmatprep.mubr.bf16.mxu0 0
  %714 = vmatmul.mubr.bf16.gmra.mxu0 %v491
  %v715 = vpop.f32.mrf.mxu0
  %v716 = vadd.f32 %v619, %v715
  %v717 = vpop.f32.mrf.mxu0
  %v718 = vpop.f32.mrf.mxu0
  %v719 = vadd.f32 %v622, %v718
  %v720 = vpop.f32.mrf.mxu0
  %721 = vdwg.mxu0
  %s722 = scalar_lea.vmem %s3, 128
  %v723 = vld [vmem:[%s722] sm:$0xf]
  %v724 = vld [vmem:[%s722 + $0x4] sm:$0xf]
  %v725 = vld [vmem:[%s722 + $0x8] sm:$0xf]
  %v726 = vld [vmem:[%s722 + $0xc] sm:$0xf]
  %v727 = vld [vmem:[%s722 + $0x10] sm:$0xf]
  %v728 = vld [vmem:[%s722 + $0x14] sm:$0xf]
  %v729 = vld [vmem:[%s722 + $0x18] sm:$0xf]
  %v730 = vld [vmem:[%s722 + $0x1c] sm:$0xf]
  %v731 = vld [vmem:[%s722 + $0x20] sm:$0xf]
  %v732 = vld [vmem:[%s722 + $0x24] sm:$0xf]
  %v733 = vld [vmem:[%s722 + $0x28] sm:$0xf]
  %v734 = vld [vmem:[%s722 + $0x2c] sm:$0xf]
  %v735 = vld [vmem:[%s722 + $0x30] sm:$0xf]
  %v736 = vld [vmem:[%s722 + $0x34] sm:$0xf]
  %v737 = vld [vmem:[%s722 + $0x38] sm:$0xf]
  %v738 = vld [vmem:[%s722 + $0x3c] sm:$0xf]
  %v742 = vrot.slane %v492, 1
  %v743 = vrot.slane %v493, 1
  %v744 = vsel %vm364, %v742, %v743
  %v745 = vrot.slane %v494, 1
  %v746 = vsel %vm364, %v743, %v745
  %v765 = vunpack.c.l.b16 %v723
  %v766 = vunpack.c.l.b16 %v724
  %v767 = vunpack.c.l.b16 %v725
  %v768 = vunpack.c.l.b16 %v726
  %v769 = vunpack.c.l.b16 %v727
  %v770 = vunpack.c.l.b16 %v728
  %v771 = vunpack.c.l.b16 %v729
  %v772 = vunpack.c.l.b16 %v730
  %v773 = vunpack.c.l.b16 %v731
  %v774 = vunpack.c.l.b16 %v732
  %v775 = vunpack.c.l.b16 %v733
  %v776 = vunpack.c.l.b16 %v734
  %v777 = vunpack.c.l.b16 %v735
  %v778 = vunpack.c.l.b16 %v736
  %v779 = vunpack.c.l.b16 %v737
  %v780 = vunpack.c.l.b16 %v738
  %v781 = vpack.c.b16 %v766, %v765
  %v782 = vpack.c.b16 %v768, %v767
  %v783 = vpack.c.b16 %v770, %v769
  %v784 = vpack.c.b16 %v772, %v771
  %v785 = vpack.c.b16 %v774, %v773
  %v786 = vpack.c.b16 %v776, %v775
  %v787 = vpack.c.b16 %v778, %v777
  %v788 = vpack.c.b16 %v780, %v779
  %797 = vmatprep.subr.bf16.mxu0 0
  %798 = vmatpush1.bf16.msra.mxu0 %v788
  %799 = vmatprep.subr.bf16.mxu0 0
  %800 = vmatpush1.bf16.msra.mxu0 %v787
  %801 = vmatprep.subr.bf16.mxu0 0
  %802 = vmatpush1.bf16.msra.mxu0 %v786
  %803 = vmatprep.subr.bf16.mxu0 0
  %804 = vmatpush1.bf16.msra.mxu0 %v785
  %805 = vmatprep.subr.bf16.mxu0 0
  %806 = vmatpush1.bf16.msra.mxu0 %v784
  %807 = vmatprep.subr.bf16.mxu0 0
  %808 = vmatpush1.bf16.msra.mxu0 %v783
  %809 = vmatprep.subr.bf16.mxu0 0
  %810 = vmatpush1.bf16.msra.mxu0 %v782
  %811 = vmatprep.subr.bf16.mxu0 0
  %812 = vmatpush1.bf16.msra.mxu0 %v781
  %813 = vmatprep.subr.bf16.mxu0 0
  %814 = vmatpush2.bf16.msra.mxu0 0
  %815 = vmatprep.subr.bf16.mxu0 0
  %816 = vmatpush2.bf16.msra.mxu0 0
  %817 = vmatprep.subr.bf16.mxu0 0
  %818 = vmatpush2.bf16.msra.mxu0 0
  %819 = vmatprep.subr.bf16.mxu0 0
  %820 = vmatpush2.bf16.msra.mxu0 0
  %821 = vmatprep.subr.bf16.mxu0 0
  %822 = vmatpush2.bf16.msra.mxu0 0
  %823 = vmatprep.subr.bf16.mxu0 0
  %824 = vmatpush2.bf16.msra.mxu0 0
  %825 = vmatprep.subr.bf16.mxu0 0
  %826 = vmatpush2.bf16.msra.mxu0 0
  %827 = vmatprep.subr.bf16.mxu0 0
  %828 = vmatpush2.bf16.msra.mxu0 0
  %829 = vmatprep.mubr.bf16.mxu0 0
  %830 = vmatmul.mubr.bf16.gmra.mxu0 %v744
  %v831 = vpop.f32.mrf.mxu0
  %v832 = vadd.f32 0.0, %v831
  %v833 = vpop.f32.mrf.mxu0
  %v834 = vpop.f32.mrf.mxu0
  %v835 = vadd.f32 0.0, %v834
  %v836 = vpop.f32.mrf.mxu0
  %837 = vmatprep.mubr.bf16.mxu0 0
  %838 = vmatmul.mubr.bf16.gmra.mxu0 %v746
  %v839 = vpop.f32.mrf.mxu0
  %v840 = vadd.f32 0.0, %v839
  %v841 = vpop.f32.mrf.mxu0
  %v842 = vpop.f32.mrf.mxu0
  %v843 = vadd.f32 0.0, %v842
  %v844 = vpop.f32.mrf.mxu0
  %845 = vdwg.mxu0
  %v846 = vadd.f32 %v708, %v832
  %v847 = vadd.f32 %v711, %v835
  %v848 = vadd.f32 %v716, %v840
  %v849 = vadd.f32 %v719, %v843
  %v850 = vld [vmem:[%s4] sm:$0x1]
  %v852 = vlaneseq
  %v853 = vshrl.u32 %v852, 7
  %v854 = vsub.s32 0, %v853
  %v855 = vrot.slane %v850, %v854
  %v857 = vadd.f32 %v846, %v855
  %v858 = vadd.f32 %v847, %v855
  %v859 = vadd.f32 %v848, %v855
  %v860 = vadd.f32 %v849, %v855
  %v861 = vmax.f32 %v857, 0.0
  %v862 = vmax.f32 %v858, 0.0
  %v863 = vmax.f32 %v859, 0.0
  %v864 = vmax.f32 %v860, 0.0
  %865 = vst [vmem:[%s5] sm:$0xff] %v861
  %866 = vst [vmem:[%s5 + $0x8] sm:$0xff] %v862
  %867 = vst [vmem:[%s5 + $0x10] sm:$0xff] %v863
  %868 = vst [vmem:[%s5 + $0x18] sm:$0xff] %v864
  // Predicated region
  $region22: #{conv_block_forward.1} parent=0 // pred_check
    _
  $region23: #{conv_block_forward.1} parent=0 // pred_check_branch
    %870 = sbr.rel (0) target = $region25
  $region24: #{conv_block_forward.1} parent=0 // pred_region
    _
  $region25: #{conv_block_forward.1} parent=0 // pred_fallthru
    _
  // Predicated region
  $region26: #{conv_block_forward.1} parent=0 // pred_check
    _
  $region27: #{conv_block_forward.1} parent=0 // pred_check_branch
    %872 = sbr.rel (0) target = $region29
  $region28: #{conv_block_forward.1} parent=0 // pred_region
    _
  $region29: #{conv_block_forward.1} parent=0 // pred_fallthru
    _

</llo_original>
